<compile_context>
chip_gen: v6e
topology: v6e:2x2x1
jax: 0.10.0
libtpu: 0.0.40
codegen_flags: <defaults>
</compile_context>

<pallas_src>
import math

import jax
import jax.numpy as jnp
from jax import lax
from jax.experimental import pallas as pl
from jax.experimental.pallas import tpu as pltpu


def cfgat_kernel(x_ref, adj_ref, wqkv_ref, out_ref):
    # x_ref:    (BB, N, F_in)    node features for this batch-block
    # adj_ref:  (BB, N, N) int8  adjacency mask (0 = no edge)
    # wqkv_ref: (F_in, 3*F_out)  [W_q / sqrt(F_out) | W_k | W_v], resident
    # out_ref:  (BB, N, F_out)
    BB, N, F_in = x_ref.shape
    F_out = out_ref.shape[-1]

    # ---- fused QKV projection: one (BB*N, F_in) @ (F_in, 3*F_out) MXU matmul
    x2d = x_ref[...].reshape(BB * N, F_in)
    qkv = jnp.dot(x2d, wqkv_ref[...], preferred_element_type=jnp.float32)
    qkv = qkv.reshape(BB, N, 3 * F_out)
    q = qkv[:, :, :F_out]                 # 1/sqrt(F_out) already folded in
    k = qkv[:, :, F_out:2 * F_out]
    v = qkv[:, :, 2 * F_out:]

    # ---- scores = (Q_scaled @ K^T)  (contract last axes; no explicit k.T)
    scores = lax.dot_general(
        q, k, (((2,), (2,)), ((0,), (0,))),
        preferred_element_type=jnp.float32)            # (BB, N, N)

    # ---- masked_fill(adj == 0, -1e9)
    adj = adj_ref[...].astype(jnp.float32)
    scores = jnp.where(adj == 0, jnp.float32(-1.0e9), scores)

    # ---- numerically-stable softmax over the neighbour axis (kept in f32)
    m = jnp.max(scores, axis=-1, keepdims=True)
    e = jnp.exp(scores - m)
    denom = jnp.sum(e, axis=-1, keepdims=True)
    attn = e * pl.reciprocal(denom, approx=True)       # EUP slot, ~free

    # TODO(synk): nn.Dropout on the attention weights is identity here (eval
    # mode); training-mode dropout would use pltpu.prng_seed +
    # pltpu.stateful_bernoulli on `attn` and rescale by 1/(1-p).

    # ---- out = attn @ V
    out = lax.dot_general(
        attn, v, (((2,), (1,)), ((0,), (0,))),
        preferred_element_type=jnp.float32)            # (BB, N, F_out)
    out_ref[...] = out.astype(out_ref.dtype)


def cfgat_forward(x, adj, w_q, w_k, w_v, *, block_b=None):
    """x: (B, N, F_in), adj: (B, N, N), W_*: (F_in, F_out) -> (B, N, F_out).

    block_b: batches processed per grid step.  Default = B (single step) —
    best for small graphs; for large B on v7x pick ~ceil(B/2) so both
    TensorCores get work via the "parallel" grid axis.
    """
    B, N, F_in = x.shape
    F_out = w_q.shape[1]

    if block_b is None:
        block_b = B
    block_b = max(1, min(block_b, B))
    n_blocks = pl.cdiv(B, block_b)

    # Fold the 1/sqrt(F_out) score scale into W_q and fuse the three
    # projection weights into one (F_in, 3*F_out) matrix (one wide matmul).
    scale = jnp.asarray(1.0 / math.sqrt(F_out), dtype=w_q.dtype)
    w_qkv = jnp.concatenate([w_q * scale, w_k, w_v], axis=1)

    # Ship the adjacency mask as int8 (4x fewer HBM bytes than f32).
    adj_i8 = (adj != 0).astype(jnp.int8)

    out_dtype = x.dtype
    flops = 2 * B * N * F_out * (3 * F_in + 2 * N)
    bytes_accessed = (
        x.size * x.dtype.itemsize
        + adj_i8.size                                   # int8
        + w_qkv.size * w_qkv.dtype.itemsize
        + B * N * F_out * jnp.dtype(out_dtype).itemsize)
    cost = pl.CostEstimate(flops=flops,
                           transcendentals=B * N * N,   # exp() per score
                           bytes_accessed=bytes_accessed)

    grid_spec = pltpu.PrefetchScalarGridSpec(
        num_scalar_prefetch=0,
        grid=(n_blocks,),
        in_specs=[
            pl.BlockSpec((block_b, N, F_in), lambda b: (b, 0, 0)),   # x
            pl.BlockSpec((block_b, N, N), lambda b: (b, 0, 0)),      # adj (i8)
            pl.BlockSpec((F_in, 3 * F_out), lambda b: (0, 0)),       # fused W
        ],
        out_specs=pl.BlockSpec((block_b, N, F_out), lambda b: (b, 0, 0)),
    )

    return pl.pallas_call(
        cfgat_kernel,
        out_shape=jax.ShapeDtypeStruct((B, N, F_out), out_dtype),
        grid_spec=grid_spec,
        compiler_params=pltpu.CompilerParams(
            dimension_semantics=("parallel",)),
        cost_estimate=cost,
    )(x, adj_i8, w_qkv)


def reference_forward(x, adj, w_q, w_k, w_v):
    """Plain-JAX reference matching the PyTorch module (eval mode)."""
    q = jnp.einsum("bnf,fo->bno", x, w_q)
    k = jnp.einsum("bnf,fo->bno", x, w_k)
    v = jnp.einsum("bnf,fo->bno", x, w_v)
    scores = jnp.einsum("bqo,bko->bqk", q, k) / jnp.sqrt(jnp.float32(w_q.shape[1]))
    scores = jnp.where(adj == 0, -1.0e9, scores)
    attn = jax.nn.softmax(scores, axis=-1)
    return jnp.einsum("bqk,bko->bqo", attn, v)


if __name__ == "__main__":
    # Small shapes consistent with the module's forward:
    #   batch B=2, nodes N=16, in_features=32, out_features=32
    B, N, F_IN, F_OUT = 2, 16, 32, 32

    key = jax.random.PRNGKey(0)
    kx, kadj, kq, kk, kv = jax.random.split(key, 5)

    x = jax.random.normal(kx, (B, N, F_IN), dtype=jnp.float32)
    # adjacency: 0/1 mask with self-loops guaranteed (so softmax rows are valid)
    adj = (jax.random.uniform(kadj, (B, N, N)) > 0.5).astype(jnp.float32)
    eye = jnp.eye(N, dtype=jnp.float32)[None, :, :]
    adj = jnp.maximum(adj, eye)

    # Deterministic parameter init (torch.randn analogue).
    w_q = jax.random.normal(kq, (F_IN, F_OUT), dtype=jnp.float32)
    w_k = jax.random.normal(kk, (F_IN, F_OUT), dtype=jnp.float32)
    w_v = jax.random.normal(kv, (F_IN, F_OUT), dtype=jnp.float32)

    out = jax.block_until_ready(cfgat_forward(x, adj, w_q, w_k, w_v))
    ref = reference_forward(x, adj, w_q, w_k, w_v)

    assert out.shape == (B, N, F_OUT)
    # approx EUP reciprocal in the softmax is the only sub-f32 step, hence the
    # slightly relaxed tolerance; everything else accumulates in f32.
    assert jnp.allclose(out, ref, atol=2e-2, rtol=2e-2), "mismatch vs reference"

    print("KERNEL_OK")
</pallas_src>

<mosaic_0001>
module attributes {stable_mosaic.version = 11 : i64} {
  func.func @cfgat_kernel(%arg0: i32, %arg1: memref<2x16x32xf32, #tpu.memory_space<vmem>>, %arg2: memref<2x16x16xi8, #tpu.memory_space<vmem>>, %arg3: memref<32x96xf32, #tpu.memory_space<vmem>>, %arg4: memref<2x16x32xf32, #tpu.memory_space<vmem>>) attributes {dimension_semantics = [#tpu.dimension_semantics<parallel>], iteration_bounds = array<i64: 1>, scalar_prefetch = 0 : i64, scratch_operands = 0 : i64, tpu.core_type = #tpu.core_type<tc>, window_params = [{transform_indices = @transform_0, window_bounds = array<i64: 2, 16, 32>}, {transform_indices = @transform_1, window_bounds = array<i64: 2, 16, 16>}, {pipeline_mode = #tpu.pipeline_mode<synchronous>, transform_indices = @transform_2, window_bounds = array<i64: 32, 96>}, {transform_indices = @transform_3, window_bounds = array<i64: 2, 16, 32>}]} {
    %c0 = arith.constant 0 : index
    %c0_0 = arith.constant 0 : index
    %c0_1 = arith.constant 0 : index
    %0 = vector.load %arg1[%c0, %c0_0, %c0_1] : memref<2x16x32xf32, #tpu.memory_space<vmem>>, vector<2x16x32xf32>
    %1 = vector.shape_cast %0 : vector<2x16x32xf32> to vector<32x32xf32>
    %c0_2 = arith.constant 0 : index
    %c0_3 = arith.constant 0 : index
    %2 = vector.load %arg3[%c0_2, %c0_3] : memref<32x96xf32, #tpu.memory_space<vmem>>, vector<32x96xf32>
    %cst = arith.constant dense<0.000000e+00> : vector<32x96xf32>
    %3 = tpu.matmul %1, %2, %cst {dimension_numbers = #tpu.dot_dimension_numbers<[1], [0], [0], [1], [0, 0, 1, 1], [], []>} : vector<32x32xf32>, vector<32x96xf32>, vector<32x96xf32> -> vector<32x96xf32>
    %4 = vector.shape_cast %3 : vector<32x96xf32> to vector<2x16x96xf32>
    %5 = vector.extract_strided_slice %4 {offsets = [0, 0, 0], sizes = [2, 16, 32], strides = [1, 1, 1]} : vector<2x16x96xf32> to vector<2x16x32xf32>
    %6 = vector.extract_strided_slice %4 {offsets = [0, 0, 32], sizes = [2, 16, 32], strides = [1, 1, 1]} : vector<2x16x96xf32> to vector<2x16x32xf32>
    %7 = vector.extract_strided_slice %4 {offsets = [0, 0, 64], sizes = [2, 16, 32], strides = [1, 1, 1]} : vector<2x16x96xf32> to vector<2x16x32xf32>
    %cst_4 = arith.constant dense<0.000000e+00> : vector<2x16x16xf32>
    %8 = tpu.matmul %5, %6, %cst_4 {dimension_numbers = #tpu.dot_dimension_numbers<[2], [2], [1], [1], [0, 0, 0, 1, 1, 1], [0], [0]>} : vector<2x16x32xf32>, vector<2x16x32xf32>, vector<2x16x16xf32> -> vector<2x16x16xf32>
    %c0_5 = arith.constant 0 : index
    %c0_6 = arith.constant 0 : index
    %c0_7 = arith.constant 0 : index
    %9 = vector.load %arg2[%c0_5, %c0_6, %c0_7] : memref<2x16x16xi8, #tpu.memory_space<vmem>>, vector<2x16x16xi8>
    %10 = arith.sitofp %9 : vector<2x16x16xi8> to vector<2x16x16xf32>
    %cst_8 = arith.constant 0.000000e+00 : f32
    %11 = vector.broadcast %cst_8 : f32 to vector<2x16x16xf32>
    %12 = arith.cmpf oeq, %10, %11 : vector<2x16x16xf32>
    %cst_9 = arith.constant -1.000000e+09 : f32
    %13 = vector.broadcast %cst_9 : f32 to vector<2x16x16xf32>
    %14 = arith.select %12, %13, %8 : vector<2x16x16xi1>, vector<2x16x16xf32>
    %cst_10 = arith.constant dense<0xFF800000> : vector<2x16xf32>
    %15 = vector.multi_reduction <maximumf>, %14, %cst_10 [2] : vector<2x16x16xf32> to vector<2x16xf32>
    %16 = vector.shape_cast %15 : vector<2x16xf32> to vector<2x16x1xf32>
    %17 = vector.broadcast %16 : vector<2x16x1xf32> to vector<2x16x16xf32>
    %18 = arith.subf %14, %17 : vector<2x16x16xf32>
    %19 = math.exp %18 : vector<2x16x16xf32>
    %cst_11 = arith.constant dense<0.000000e+00> : vector<2x16xf32>
    %20 = vector.multi_reduction <add>, %19, %cst_11 [2] : vector<2x16x16xf32> to vector<2x16xf32>
    %21 = vector.shape_cast %20 : vector<2x16xf32> to vector<2x16x1xf32>
    %22 = tpu.reciprocal %21 {approx = true} : vector<2x16x1xf32> -> vector<2x16x1xf32>
    %23 = vector.broadcast %22 : vector<2x16x1xf32> to vector<2x16x16xf32>
    %24 = arith.mulf %19, %23 : vector<2x16x16xf32>
    %cst_12 = arith.constant dense<0.000000e+00> : vector<2x16x32xf32>
    %25 = tpu.matmul %24, %7, %cst_12 {dimension_numbers = #tpu.dot_dimension_numbers<[2], [1], [1], [2], [0, 0, 0, 1, 1, 2], [0], [0]>} : vector<2x16x16xf32>, vector<2x16x32xf32>, vector<2x16x32xf32> -> vector<2x16x32xf32>
    %c0_13 = arith.constant 0 : index
    %c0_14 = arith.constant 0 : index
    %c0_15 = arith.constant 0 : index
    %26 = vector.load %arg4[%c0_13, %c0_14, %c0_15] : memref<2x16x32xf32, #tpu.memory_space<vmem>>, vector<2x16x32xf32>
    tpu.vector_store %arg4[%c0_13, %c0_14, %c0_15], %25 {strides = array<i32>} : memref<2x16x32xf32, #tpu.memory_space<vmem>>, vector<2x16x32xf32>,
    return
  }
  func.func @transform_0(%arg0: i32) -> (i32, i32, i32) {
    %c0_i32 = arith.constant 0 : i32
    %c0_i32_0 = arith.constant 0 : i32
    %c0_i32_1 = arith.constant 0 : i32
    return %arg0, %c0_i32, %c0_i32_0 : i32, i32, i32
  }
  func.func @transform_1(%arg0: i32) -> (i32, i32, i32) {
    %c0_i32 = arith.constant 0 : i32
    %c0_i32_0 = arith.constant 0 : i32
    %c0_i32_1 = arith.constant 0 : i32
    return %arg0, %c0_i32, %c0_i32_0 : i32, i32, i32
  }
  func.func @transform_2(%arg0: i32) -> (i32, i32) {
    %c0_i32 = arith.constant 0 : i32
    %c0_i32_0 = arith.constant 0 : i32
    %c0_i32_1 = arith.constant 0 : i32
    return %c0_i32, %c0_i32_0 : i32, i32
  }
  func.func @transform_3(%arg0: i32) -> (i32, i32, i32) {
    %c0_i32 = arith.constant 0 : i32
    %c0_i32_0 = arith.constant 0 : i32
    %c0_i32_1 = arith.constant 0 : i32
    return %arg0, %c0_i32, %c0_i32_0 : i32, i32, i32
  }
}

</mosaic_0001>

<llo_original>
// kernel: tpu_custom_call.1
$region0: #{tpu_custom_call.1}
  #allocation0 [shape = 'u32[]', space=smem, size = 0x4, offset = 0x4, fixed_abs, tag = 'smem constant byte address 0x4 - core index']
  #allocation1 [shape = 'u32[144,128]{1,0:T(1,128)}', space=vmem, size = 0x12000, scoped, tag = 'internal scratch']
  %s0 = inlined_call_operand.hbm [shape: f32[2,16,32], index: 0, kind: input, shape index: {}]
  %s1 = inlined_call_operand.hbm [shape: s8[2,16,16], index: 1, kind: input, shape index: {}]
  %s2 = inlined_call_operand.hbm [shape: f32[32,96], index: 2, kind: input, shape index: {}]
  %s3 = inlined_call_operand.hbm [shape: f32[2,16,32], index: 3, kind: output, shape index: {}]
  %s4 = sld [smem:[#allocation0]]
  $region34: #{tpu_custom_call.1} parent=0
    _
  %s6 = ssub.s32 1, %s4
  %s7 = scalar_select 0, %s6, %s4
  $region1: #{tpu_custom_call.1} parent=0
    #allocation2 [shape = 'u8[16384]{0}', space=vmem, size = 0x4000, scoped, tag = 'input window, operand 0, single buffered']
    #allocation3 [shape = 's32[1]{0}', space=sflag, size = 0x4, scoped, tag = 'scoped memory for tpu_custom_call.1']
    #allocation4 [shape = 's32[1]{0}', space=sflag, size = 0x4, scoped, tag = 'scoped memory for tpu_custom_call.1']
    #allocation5 [shape = 'u8[4096]{0}', space=vmem, size = 0x1000, scoped, tag = 'input window, operand 1, single buffered']
    #allocation6 [shape = 's32[1]{0}', space=sflag, size = 0x4, scoped, tag = 'scoped memory for tpu_custom_call.1']
    #allocation7 [shape = 'u8[16384]{0}', space=vmem, size = 0x4000, scoped, tag = 'input window, operand 2, single buffered']
    #allocation8 [shape = 'u8[16384]{0}', space=vmem, size = 0x4000, scoped, tag = 'output window, operand 0, single buffered']
    %8 = vsyncpa [#allocation3], 0
    %9 = vsyncpa [#allocation6], 0
    %10 = vsyncpa [#allocation4], 0
    // Predicated region
    $region2: #{tpu_custom_call.1} parent=1 // pred_check
      _
    $region3: #{tpu_custom_call.1} parent=1 // pred_check_branch
      %12 = sbr.rel (0) target = $region5
    $region4: #{tpu_custom_call.1} parent=1 // pred_region
      %s14 = ssub.s32 512, 512
      %15 = vsyncadd [#allocation3], %s14
      %s16 = sshll.u32 [#allocation2], 4
      %s17 = int_to_ptr.vmem [resolvable:$true] %s16
      %22 = dma.hbm_to_vmem [thread:$0]  %s0, 512, %s17, [#allocation3], 128, 128, 8
    $region5: #{tpu_custom_call.1} parent=1 // pred_fallthru
      _
    // Predicated region
    $region6: #{tpu_custom_call.1} parent=1 // pred_check
      _
    $region7: #{tpu_custom_call.1} parent=1 // pred_check_branch
      %24 = sbr.rel (0) target = $region9
    $region8: #{tpu_custom_call.1} parent=1 // pred_region
      %s26 = ssub.s32 128, 128
      %27 = vsyncadd [#allocation6], %s26
      %s28 = sshll.u32 [#allocation5], 4
      %s29 = int_to_ptr.vmem [resolvable:$true] %s28
      %34 = dma.hbm_to_vmem [thread:$0]  %s1, 128, %s29, [#allocation6], 32, 32, 2
    $region9: #{tpu_custom_call.1} parent=1 // pred_fallthru
      _
    // Predicated region
    $region10: #{tpu_custom_call.1} parent=1 // pred_check
      _
    $region11: #{tpu_custom_call.1} parent=1 // pred_check_branch
      %36 = sbr.rel (0) target = $region13
    $region12: #{tpu_custom_call.1} parent=1 // pred_region
      %s38 = ssub.s32 512, 512
      %39 = vsyncadd [#allocation6], %s38
      %s40 = sshll.u32 [#allocation7], 4
      %s41 = int_to_ptr.vmem [resolvable:$true] %s40
      %46 = dma.hbm_to_vmem [thread:$0]  %s2, 512, %s41, [#allocation6], 128, 128, 8
    $region13: #{tpu_custom_call.1} parent=1 // pred_fallthru
      _
    // Predicated region
    $region14: #{tpu_custom_call.1} parent=1 // pred_check
      _
    $region15: #{tpu_custom_call.1} parent=1 // pred_check_branch
      %48 = sbr.rel (0) target = $region17
    $region16: #{tpu_custom_call.1} parent=1 // pred_region
      %49 = dma.done [#allocation3], 512
    $region17: #{tpu_custom_call.1} parent=1 // pred_fallthru
      _
    // Predicated region
    $region18: #{tpu_custom_call.1} parent=1 // pred_check
      _
    $region19: #{tpu_custom_call.1} parent=1 // pred_check_branch
      %51 = sbr.rel (0) target = $region21
    $region20: #{tpu_custom_call.1} parent=1 // pred_region
      %52 = dma.done [#allocation6], 128
    $region21: #{tpu_custom_call.1} parent=1 // pred_fallthru
      _
    // Predicated region
    $region22: #{tpu_custom_call.1} parent=1 // pred_check
      _
    $region23: #{tpu_custom_call.1} parent=1 // pred_check_branch
      %54 = sbr.rel (0) target = $region25
    $region24: #{tpu_custom_call.1} parent=1 // pred_region
      %55 = dma.done [#allocation6], 512
    $region25: #{tpu_custom_call.1} parent=1 // pred_fallthru
      _
    %v56 = vld [vmem:[#allocation2] sm:$0xff]
    %v57 = vld [vmem:[#allocation2 + $0x8] sm:$0xff]
    %v58 = vld [vmem:[#allocation2 + $0x10] sm:$0xff]
    %v59 = vld [vmem:[#allocation2 + $0x18] sm:$0xff]
    %v60 = vld [vmem:[#allocation7] sm:$0xff]
    %v61 = vld [vmem:[#allocation7 + $0x8] sm:$0xff]
    %v62 = vld [vmem:[#allocation7 + $0x10] sm:$0xff]
    %v63 = vld [vmem:[#allocation7 + $0x18] sm:$0xff]
    %vm64 = vcmask 261120
    %v66 = vsel %vm64, %v56, 0
    %v69 = vsel %vm64, %v57, 0
    %v72 = vsel %vm64, %v58, 0
    %v75 = vsel %vm64, %v59, 0
    %77 = vmatprep.subr.mxu0 0.0
    %78 = vmatpush1.msra.mxu0 0.0
    %79 = vmatprep.subr.mxu0 0.0
    %80 = vmatpush1.msra.mxu0 0.0
    %81 = vmatprep.subr.mxu0 0.0
    %82 = vmatpush1.msra.mxu0 0.0
    %83 = vmatprep.subr.mxu0 0.0
    %84 = vmatpush1.msra.mxu0 0.0
    %85 = vmatprep.subr.mxu0 0.0
    %86 = vmatpush1.msra.mxu0 0.0
    %87 = vmatprep.subr.mxu0 0.0
    %88 = vmatpush1.msra.mxu0 0.0
    %89 = vmatprep.subr.mxu0 0.0
    %90 = vmatpush1.msra.mxu0 0.0
    %91 = vmatprep.subr.mxu0 0.0
    %92 = vmatpush1.msra.mxu0 0.0
    %93 = vmatprep.subr.mxu0 0.0
    %94 = vmatpush1.msra.mxu0 0.0
    %95 = vmatprep.subr.mxu0 0.0
    %96 = vmatpush1.msra.mxu0 0.0
    %97 = vmatprep.subr.mxu0 0.0
    %98 = vmatpush1.msra.mxu0 0.0
    %99 = vmatprep.subr.mxu0 0.0
    %100 = vmatpush1.msra.mxu0 0.0
    %101 = vmatprep.subr.mxu0 0.0
    %102 = vmatpush1.msra.mxu0 %v63
    %103 = vmatprep.subr.mxu0 0.0
    %104 = vmatpush1.msra.mxu0 %v62
    %105 = vmatprep.subr.mxu0 0.0
    %106 = vmatpush1.msra.mxu0 %v61
    %107 = vmatprep.subr.mxu0 0.0
    %108 = vmatpush1.msra.mxu0 %v60
    %109 = vmatprep.subr.mxu0 0.0
    %110 = vmatpush2.msra.mxu0 0.0
    %111 = vmatprep.subr.mxu0 0.0
    %112 = vmatpush2.msra.mxu0 0.0
    %113 = vmatprep.subr.mxu0 0.0
    %114 = vmatpush2.msra.mxu0 0.0
    %115 = vmatprep.subr.mxu0 0.0
    %116 = vmatpush2.msra.mxu0 0.0
    %117 = vmatprep.subr.mxu0 0.0
    %118 = vmatpush2.msra.mxu0 0.0
    %119 = vmatprep.subr.mxu0 0.0
    %120 = vmatpush2.msra.mxu0 0.0
    %121 = vmatprep.subr.mxu0 0.0
    %122 = vmatpush2.msra.mxu0 0.0
    %123 = vmatprep.subr.mxu0 0.0
    %124 = vmatpush2.msra.mxu0 0.0
    %125 = vmatprep.subr.mxu0 0.0
    %126 = vmatpush2.msra.mxu0 0.0
    %127 = vmatprep.subr.mxu0 0.0
    %128 = vmatpush2.msra.mxu0 0.0
    %129 = vmatprep.subr.mxu0 0.0
    %130 = vmatpush2.msra.mxu0 0.0
    %131 = vmatprep.subr.mxu0 0.0
    %132 = vmatpush2.msra.mxu0 0.0
    %133 = vmatprep.subr.mxu0 0.0
    %134 = vmatpush2.msra.mxu0 0.0
    %135 = vmatprep.subr.mxu0 0.0
    %136 = vmatpush2.msra.mxu0 0.0
    %137 = vmatprep.subr.mxu0 0.0
    %138 = vmatpush2.msra.mxu0 0.0
    %139 = vmatprep.subr.mxu0 0.0
    %140 = vmatpush2.msra.mxu0 0.0
    %141 = vmatprep.mubr.f32.mxu0 0.0
    %142 = vmatmul.mubr.f32.gmra.mxu0 %v66
    %v143 = vpop.f32.mrf.mxu0
    %v144 = vadd.f32 0.0, %v143
    %v145 = vpop.f32.mrf.mxu0
    %146 = vmatprep.mubr.f32.mxu0 0.0
    %147 = vmatmul.mubr.f32.gmra.mxu0 %v69
    %v148 = vpop.f32.mrf.mxu0
    %v149 = vadd.f32 0.0, %v148
    %v150 = vpop.f32.mrf.mxu0
    %151 = vmatprep.mubr.f32.mxu0 0.0
    %152 = vmatmul.mubr.f32.gmra.mxu0 %v72
    %v153 = vpop.f32.mrf.mxu0
    %v154 = vadd.f32 0.0, %v153
    %v155 = vpop.f32.mrf.mxu0
    %156 = vmatprep.mubr.f32.mxu0 0.0
    %157 = vmatmul.mubr.f32.gmra.mxu0 %v75
    %v158 = vpop.f32.mrf.mxu0
    %v159 = vadd.f32 0.0, %v158
    %v160 = vpop.f32.mrf.mxu0
    %161 = vdwg.mxu0
    %164 = vrot.lane.b32.xlu0 %v144, 96
    %v165 = vpop.permute.xlu0 %164
    %166 = vrot.lane.b32.xlu0 %v149, 96
    %v167 = vpop.permute.xlu0 %166
    %v168 = vsel %vm64, %v144, 0
    %v170 = vsel %vm64, %v149, 0
    %v172 = vsel %vm64, %v165, 0
    %v174 = vsel %vm64, %v167, 0
    %176 = vmatprep.subr.mxu0 0.0
    %177 = vmatpush1.xpose.msra.mxu0 0.0
    %178 = vmatprep.subr.mxu0 0.0
    %179 = vmatpush1.xpose.msra.mxu0 0.0
    %180 = vmatprep.subr.mxu0 0.0
    %181 = vmatpush1.xpose.msra.mxu0 0.0
    %182 = vmatprep.subr.mxu0 0.0
    %183 = vmatpush1.xpose.msra.mxu0 0.0
    %184 = vmatprep.subr.mxu0 0.0
    %185 = vmatpush1.xpose.msra.mxu0 0.0
    %186 = vmatprep.subr.mxu0 0.0
    %187 = vmatpush1.xpose.msra.mxu0 0.0
    %188 = vmatprep.subr.mxu0 0.0
    %189 = vmatpush1.xpose.msra.mxu0 0.0
    %190 = vmatprep.subr.mxu0 0.0
    %191 = vmatpush1.xpose.msra.mxu0 0.0
    %192 = vmatprep.subr.mxu0 0.0
    %193 = vmatpush1.xpose.msra.mxu0 0.0
    %194 = vmatprep.subr.mxu0 0.0
    %195 = vmatpush1.xpose.msra.mxu0 0.0
    %196 = vmatprep.subr.mxu0 0.0
    %197 = vmatpush1.xpose.msra.mxu0 0.0
    %198 = vmatprep.subr.mxu0 0.0
    %199 = vmatpush1.xpose.msra.mxu0 0.0
    %200 = vmatprep.subr.mxu0 0.0
    %201 = vmatpush1.xpose.msra.mxu0 0.0
    %202 = vmatprep.subr.mxu0 0.0
    %203 = vmatpush1.xpose.msra.mxu0 0.0
    %204 = vmatprep.subr.mxu0 0.0
    %205 = vmatpush1.xpose.msra.mxu0 %v174
    %206 = vmatprep.subr.mxu0 0.0
    %207 = vmatpush1.xpose.msra.mxu0 %v172
    %208 = vmatprep.subr.mxu0 0.0
    %209 = vmatpush2.xpose.msra.mxu0 0.0
    %210 = vmatprep.subr.mxu0 0.0
    %211 = vmatpush2.xpose.msra.mxu0 0.0
    %212 = vmatprep.subr.mxu0 0.0
    %213 = vmatpush2.xpose.msra.mxu0 0.0
    %214 = vmatprep.subr.mxu0 0.0
    %215 = vmatpush2.xpose.msra.mxu0 0.0
    %216 = vmatprep.subr.mxu0 0.0
    %217 = vmatpush2.xpose.msra.mxu0 0.0
    %218 = vmatprep.subr.mxu0 0.0
    %219 = vmatpush2.xpose.msra.mxu0 0.0
    %220 = vmatprep.subr.mxu0 0.0
    %221 = vmatpush2.xpose.msra.mxu0 0.0
    %222 = vmatprep.subr.mxu0 0.0
    %223 = vmatpush2.xpose.msra.mxu0 0.0
    %224 = vmatprep.subr.mxu0 0.0
    %225 = vmatpush2.xpose.msra.mxu0 0.0
    %226 = vmatprep.subr.mxu0 0.0
    %227 = vmatpush2.xpose.msra.mxu0 0.0
    %228 = vmatprep.subr.mxu0 0.0
    %229 = vmatpush2.xpose.msra.mxu0 0.0
    %230 = vmatprep.subr.mxu0 0.0
    %231 = vmatpush2.xpose.msra.mxu0 0.0
    %232 = vmatprep.subr.mxu0 0.0
    %233 = vmatpush2.xpose.msra.mxu0 0.0
    %234 = vmatprep.subr.mxu0 0.0
    %235 = vmatpush2.xpose.msra.mxu0 0.0
    %236 = vmatprep.subr.mxu0 0.0
    %237 = vmatpush2.xpose.msra.mxu0 0.0
    %238 = vmatprep.subr.mxu0 0.0
    %239 = vmatpush2.xpose.msra.mxu0 0.0
    %240 = vmatprep.mubr.f32.mxu0 0.0
    %241 = vmatmul.mubr.f32.gmra.mxu0 %v168
    %v242 = vpop.f32.mrf.mxu0
    %v243 = vadd.f32 0.0, %v242
    %v244 = vpop.f32.mrf.mxu0
    %245 = vmatprep.mubr.f32.mxu0 0.0
    %246 = vmatmul.mubr.f32.gmra.mxu0 %v170
    %v247 = vpop.f32.mrf.mxu0
    %v248 = vadd.f32 0.0, %v247
    %v249 = vpop.f32.mrf.mxu0
    %250 = vdwg.mxu0
    %253 = vrot.lane.b32.xlu0 %v154, 96
    %v254 = vpop.permute.xlu0 %253
    %255 = vrot.lane.b32.xlu0 %v159, 96
    %v256 = vpop.permute.xlu0 %255
    %v257 = vsel %vm64, %v154, 0
    %v259 = vsel %vm64, %v159, 0
    %v261 = vsel %vm64, %v254, 0
    %v263 = vsel %vm64, %v256, 0
    %265 = vmatprep.subr.mxu0 0.0
    %266 = vmatpush1.xpose.msra.mxu0 0.0
    %267 = vmatprep.subr.mxu0 0.0
    %268 = vmatpush1.xpose.msra.mxu0 0.0
    %269 = vmatprep.subr.mxu0 0.0
    %270 = vmatpush1.xpose.msra.mxu0 0.0
    %271 = vmatprep.subr.mxu0 0.0
    %272 = vmatpush1.xpose.msra.mxu0 0.0
    %273 = vmatprep.subr.mxu0 0.0
    %274 = vmatpush1.xpose.msra.mxu0 0.0
    %275 = vmatprep.subr.mxu0 0.0
    %276 = vmatpush1.xpose.msra.mxu0 0.0
    %277 = vmatprep.subr.mxu0 0.0
    %278 = vmatpush1.xpose.msra.mxu0 0.0
    %279 = vmatprep.subr.mxu0 0.0
    %280 = vmatpush1.xpose.msra.mxu0 0.0
    %281 = vmatprep.subr.mxu0 0.0
    %282 = vmatpush1.xpose.msra.mxu0 0.0
    %283 = vmatprep.subr.mxu0 0.0
    %284 = vmatpush1.xpose.msra.mxu0 0.0
    %285 = vmatprep.subr.mxu0 0.0
    %286 = vmatpush1.xpose.msra.mxu0 0.0
    %287 = vmatprep.subr.mxu0 0.0
    %288 = vmatpush1.xpose.msra.mxu0 0.0
    %289 = vmatprep.subr.mxu0 0.0
    %290 = vmatpush1.xpose.msra.mxu0 0.0
    %291 = vmatprep.subr.mxu0 0.0
    %292 = vmatpush1.xpose.msra.mxu0 0.0
    %293 = vmatprep.subr.mxu0 0.0
    %294 = vmatpush1.xpose.msra.mxu0 %v263
    %295 = vmatprep.subr.mxu0 0.0
    %296 = vmatpush1.xpose.msra.mxu0 %v261
    %297 = vmatprep.subr.mxu0 0.0
    %298 = vmatpush2.xpose.msra.mxu0 0.0
    %299 = vmatprep.subr.mxu0 0.0
    %300 = vmatpush2.xpose.msra.mxu0 0.0
    %301 = vmatprep.subr.mxu0 0.0
    %302 = vmatpush2.xpose.msra.mxu0 0.0
    %303 = vmatprep.subr.mxu0 0.0
    %304 = vmatpush2.xpose.msra.mxu0 0.0
    %305 = vmatprep.subr.mxu0 0.0
    %306 = vmatpush2.xpose.msra.mxu0 0.0
    %307 = vmatprep.subr.mxu0 0.0
    %308 = vmatpush2.xpose.msra.mxu0 0.0
    %309 = vmatprep.subr.mxu0 0.0
    %310 = vmatpush2.xpose.msra.mxu0 0.0
    %311 = vmatprep.subr.mxu0 0.0
    %312 = vmatpush2.xpose.msra.mxu0 0.0
    %313 = vmatprep.subr.mxu0 0.0
    %314 = vmatpush2.xpose.msra.mxu0 0.0
    %315 = vmatprep.subr.mxu0 0.0
    %316 = vmatpush2.xpose.msra.mxu0 0.0
    %317 = vmatprep.subr.mxu0 0.0
    %318 = vmatpush2.xpose.msra.mxu0 0.0
    %319 = vmatprep.subr.mxu0 0.0
    %320 = vmatpush2.xpose.msra.mxu0 0.0
    %321 = vmatprep.subr.mxu0 0.0
    %322 = vmatpush2.xpose.msra.mxu0 0.0
    %323 = vmatprep.subr.mxu0 0.0
    %324 = vmatpush2.xpose.msra.mxu0 0.0
    %325 = vmatprep.subr.mxu0 0.0
    %326 = vmatpush2.xpose.msra.mxu0 0.0
    %327 = vmatprep.subr.mxu0 0.0
    %328 = vmatpush2.xpose.msra.mxu0 0.0
    %329 = vmatprep.mubr.f32.mxu0 0.0
    %330 = vmatmul.mubr.f32.gmra.mxu0 %v257
    %v331 = vpop.f32.mrf.mxu0
    %v332 = vadd.f32 0.0, %v331
    %v333 = vpop.f32.mrf.mxu0
    %334 = vmatprep.mubr.f32.mxu0 0.0
    %335 = vmatmul.mubr.f32.gmra.mxu0 %v259
    %v336 = vpop.f32.mrf.mxu0
    %v337 = vadd.f32 0.0, %v336
    %v338 = vpop.f32.mrf.mxu0
    %339 = vdwg.mxu0
    %v340 = vld [vmem:[#allocation5] sm:$0x3]
    %v341 = vld [vmem:[#allocation5 + $0x2] sm:$0x3]
    %v342 = vld [vmem:[#allocation5 + $0x4] sm:$0x3]
    %v343 = vld [vmem:[#allocation5 + $0x6] sm:$0x3]
    %v344 = vunpack.c.0.s8 %v340
    %v345 = vunpack.c.0.s8 %v341
    %v346 = vunpack.c.0.s8 %v342
    %v347 = vunpack.c.0.s8 %v343
    %v348 = vcvt.s32.f32 %v344
    %v349 = vcvt.s32.f32 %v345
    %v350 = vcvt.s32.f32 %v346
    %v351 = vcvt.s32.f32 %v347
    %vm352 = vcmp.eq.f32.partialorder %v348, 0.0
    %vm353 = vcmp.eq.f32.partialorder %v349, 0.0
    %vm354 = vcmp.eq.f32.partialorder %v350, 0.0
    %vm355 = vcmp.eq.f32.partialorder %v351, 0.0
    %v356 = vsel %vm352, -1e+09, %v243
    %v357 = vsel %vm353, -1e+09, %v248
    %v358 = vsel %vm354, -1e+09, %v332
    %v359 = vsel %vm355, -1e+09, %v337
    %vm360 = vcmask 130048
    %v361 = vsel %vm360, %v356, -inf
    %362 = vmax.xlane.f32.xlu0 %v361
    %v363 = vpop.xlane.xlu0 %362
    %v364 = vsel %vm360, %v357, -inf
    %365 = vmax.xlane.f32.xlu0 %v364
    %v366 = vpop.xlane.xlu0 %365
    %v367 = vsel %vm360, %v358, -inf
    %368 = vmax.xlane.f32.xlu0 %v367
    %v369 = vpop.xlane.xlu0 %368
    %v370 = vsel %vm360, %v359, -inf
    %371 = vmax.xlane.f32.xlu0 %v370
    %v372 = vpop.xlane.xlu0 %371
    %v373 = vsub.f32 %v356, %v363
    %v374 = vsub.f32 %v357, %v366
    %v375 = vsub.f32 %v358, %v369
    %v376 = vsub.f32 %v359, %v372
    %v377 = vmul.f32 %v373, 1.442695
    %v378 = vpow.pop %v377
    %v379 = vmul.f32 %v374, 1.442695
    %v380 = vpow.pop %v379
    %v381 = vmul.f32 %v375, 1.442695
    %v382 = vpow.pop %v381
    %v383 = vmul.f32 %v376, 1.442695
    %v384 = vpow.pop %v383
    %v385 = vsel %vm360, %v378, 0.0
    %386 = vadd.xlane.f32.xlu0 %v385
    %v387 = vpop.xlane.xlu0 %386
    %v388 = vsel %vm360, %v380, 0.0
    %389 = vadd.xlane.f32.xlu0 %v388
    %v390 = vpop.xlane.xlu0 %389
    %v391 = vsel %vm360, %v382, 0.0
    %392 = vadd.xlane.f32.xlu0 %v391
    %v393 = vpop.xlane.xlu0 %392
    %v394 = vsel %vm360, %v384, 0.0
    %395 = vadd.xlane.f32.xlu0 %v394
    %v396 = vpop.xlane.xlu0 %395
    %v397 = vrcp.pop %v387
    %v398 = vrcp.pop %v390
    %v399 = vrcp.pop %v393
    %v400 = vrcp.pop %v396
    %v401 = vmul.f32 %v378, %v397
    %v402 = vmul.f32 %v380, %v398
    %v403 = vmul.f32 %v382, %v399
    %v404 = vmul.f32 %v384, %v400
    %405 = vrot.lane.b32.xlu0 %v144, 64
    %v406 = vpop.permute.xlu0 %405
    %407 = vrot.lane.b32.xlu0 %v149, 64
    %v408 = vpop.permute.xlu0 %407
    %v412 = vsel %vm360, %v401, 0
    %v415 = vsel %vm360, %v402, 0
    %417 = vmatprep.subr.mxu0 0.0
    %418 = vmatpush1.msra.mxu0 0.0
    %419 = vmatprep.subr.mxu0 0.0
    %420 = vmatpush1.msra.mxu0 0.0
    %421 = vmatprep.subr.mxu0 0.0
    %422 = vmatpush1.msra.mxu0 0.0
    %423 = vmatprep.subr.mxu0 0.0
    %424 = vmatpush1.msra.mxu0 0.0
    %425 = vmatprep.subr.mxu0 0.0
    %426 = vmatpush1.msra.mxu0 0.0
    %427 = vmatprep.subr.mxu0 0.0
    %428 = vmatpush1.msra.mxu0 0.0
    %429 = vmatprep.subr.mxu0 0.0
    %430 = vmatpush1.msra.mxu0 0.0
    %431 = vmatprep.subr.mxu0 0.0
    %432 = vmatpush1.msra.mxu0 0.0
    %433 = vmatprep.subr.mxu0 0.0
    %434 = vmatpush1.msra.mxu0 0.0
    %435 = vmatprep.subr.mxu0 0.0
    %436 = vmatpush1.msra.mxu0 0.0
    %437 = vmatprep.subr.mxu0 0.0
    %438 = vmatpush1.msra.mxu0 0.0
    %439 = vmatprep.subr.mxu0 0.0
    %440 = vmatpush1.msra.mxu0 0.0
    %441 = vmatprep.subr.mxu0 0.0
    %442 = vmatpush1.msra.mxu0 0.0
    %443 = vmatprep.subr.mxu0 0.0
    %444 = vmatpush1.msra.mxu0 0.0
    %445 = vmatprep.subr.mxu0 0.0
    %446 = vmatpush1.msra.mxu0 %v408
    %447 = vmatprep.subr.mxu0 0.0
    %448 = vmatpush1.msra.mxu0 %v406
    %449 = vmatprep.subr.mxu0 0.0
    %450 = vmatpush2.msra.mxu0 0.0
    %451 = vmatprep.subr.mxu0 0.0
    %452 = vmatpush2.msra.mxu0 0.0
    %453 = vmatprep.subr.mxu0 0.0
    %454 = vmatpush2.msra.mxu0 0.0
    %455 = vmatprep.subr.mxu0 0.0
    %456 = vmatpush2.msra.mxu0 0.0
    %457 = vmatprep.subr.mxu0 0.0
    %458 = vmatpush2.msra.mxu0 0.0
    %459 = vmatprep.subr.mxu0 0.0
    %460 = vmatpush2.msra.mxu0 0.0
    %461 = vmatprep.subr.mxu0 0.0
    %462 = vmatpush2.msra.mxu0 0.0
    %463 = vmatprep.subr.mxu0 0.0
    %464 = vmatpush2.msra.mxu0 0.0
    %465 = vmatprep.subr.mxu0 0.0
    %466 = vmatpush2.msra.mxu0 0.0
    %467 = vmatprep.subr.mxu0 0.0
    %468 = vmatpush2.msra.mxu0 0.0
    %469 = vmatprep.subr.mxu0 0.0
    %470 = vmatpush2.msra.mxu0 0.0
    %471 = vmatprep.subr.mxu0 0.0
    %472 = vmatpush2.msra.mxu0 0.0
    %473 = vmatprep.subr.mxu0 0.0
    %474 = vmatpush2.msra.mxu0 0.0
    %475 = vmatprep.subr.mxu0 0.0
    %476 = vmatpush2.msra.mxu0 0.0
    %477 = vmatprep.subr.mxu0 0.0
    %478 = vmatpush2.msra.mxu0 0.0
    %479 = vmatprep.subr.mxu0 0.0
    %480 = vmatpush2.msra.mxu0 0.0
    %481 = vmatprep.mubr.f32.mxu0 0.0
    %482 = vmatmul.mubr.f32.gmra.mxu0 %v412
    %v483 = vpop.f32.mrf.mxu0
    %v484 = vadd.f32 0.0, %v483
    %v485 = vpop.f32.mrf.mxu0
    %486 = vmatprep.mubr.f32.mxu0 0.0
    %487 = vmatmul.mubr.f32.gmra.mxu0 %v415
    %v488 = vpop.f32.mrf.mxu0
    %v489 = vadd.f32 0.0, %v488
    %v490 = vpop.f32.mrf.mxu0
    %491 = vdwg.mxu0
    %492 = vrot.lane.b32.xlu0 %v154, 64
    %v493 = vpop.permute.xlu0 %492
    %494 = vrot.lane.b32.xlu0 %v159, 64
    %v495 = vpop.permute.xlu0 %494
    %v499 = vsel %vm360, %v403, 0
    %v502 = vsel %vm360, %v404, 0
    %504 = vmatprep.subr.mxu0 0.0
    %505 = vmatpush1.msra.mxu0 0.0
    %506 = vmatprep.subr.mxu0 0.0
    %507 = vmatpush1.msra.mxu0 0.0
    %508 = vmatprep.subr.mxu0 0.0
    %509 = vmatpush1.msra.mxu0 0.0
    %510 = vmatprep.subr.mxu0 0.0
    %511 = vmatpush1.msra.mxu0 0.0
    %512 = vmatprep.subr.mxu0 0.0
    %513 = vmatpush1.msra.mxu0 0.0
    %514 = vmatprep.subr.mxu0 0.0
    %515 = vmatpush1.msra.mxu0 0.0
    %516 = vmatprep.subr.mxu0 0.0
    %517 = vmatpush1.msra.mxu0 0.0
    %518 = vmatprep.subr.mxu0 0.0
    %519 = vmatpush1.msra.mxu0 0.0
    %520 = vmatprep.subr.mxu0 0.0
    %521 = vmatpush1.msra.mxu0 0.0
    %522 = vmatprep.subr.mxu0 0.0
    %523 = vmatpush1.msra.mxu0 0.0
    %524 = vmatprep.subr.mxu0 0.0
    %525 = vmatpush1.msra.mxu0 0.0
    %526 = vmatprep.subr.mxu0 0.0
    %527 = vmatpush1.msra.mxu0 0.0
    %528 = vmatprep.subr.mxu0 0.0
    %529 = vmatpush1.msra.mxu0 0.0
    %530 = vmatprep.subr.mxu0 0.0
    %531 = vmatpush1.msra.mxu0 0.0
    %532 = vmatprep.subr.mxu0 0.0
    %533 = vmatpush1.msra.mxu0 %v495
    %534 = vmatprep.subr.mxu0 0.0
    %535 = vmatpush1.msra.mxu0 %v493
    %536 = vmatprep.subr.mxu0 0.0
    %537 = vmatpush2.msra.mxu0 0.0
    %538 = vmatprep.subr.mxu0 0.0
    %539 = vmatpush2.msra.mxu0 0.0
    %540 = vmatprep.subr.mxu0 0.0
    %541 = vmatpush2.msra.mxu0 0.0
    %542 = vmatprep.subr.mxu0 0.0
    %543 = vmatpush2.msra.mxu0 0.0
    %544 = vmatprep.subr.mxu0 0.0
    %545 = vmatpush2.msra.mxu0 0.0
    %546 = vmatprep.subr.mxu0 0.0
    %547 = vmatpush2.msra.mxu0 0.0
    %548 = vmatprep.subr.mxu0 0.0
    %549 = vmatpush2.msra.mxu0 0.0
    %550 = vmatprep.subr.mxu0 0.0
    %551 = vmatpush2.msra.mxu0 0.0
    %552 = vmatprep.subr.mxu0 0.0
    %553 = vmatpush2.msra.mxu0 0.0
    %554 = vmatprep.subr.mxu0 0.0
    %555 = vmatpush2.msra.mxu0 0.0
    %556 = vmatprep.subr.mxu0 0.0
    %557 = vmatpush2.msra.mxu0 0.0
    %558 = vmatprep.subr.mxu0 0.0
    %559 = vmatpush2.msra.mxu0 0.0
    %560 = vmatprep.subr.mxu0 0.0
    %561 = vmatpush2.msra.mxu0 0.0
    %562 = vmatprep.subr.mxu0 0.0
    %563 = vmatpush2.msra.mxu0 0.0
    %564 = vmatprep.subr.mxu0 0.0
    %565 = vmatpush2.msra.mxu0 0.0
    %566 = vmatprep.subr.mxu0 0.0
    %567 = vmatpush2.msra.mxu0 0.0
    %568 = vmatprep.mubr.f32.mxu0 0.0
    %569 = vmatmul.mubr.f32.gmra.mxu0 %v499
    %v570 = vpop.f32.mrf.mxu0
    %v571 = vadd.f32 0.0, %v570
    %v572 = vpop.f32.mrf.mxu0
    %573 = vmatprep.mubr.f32.mxu0 0.0
    %574 = vmatmul.mubr.f32.gmra.mxu0 %v502
    %v575 = vpop.f32.mrf.mxu0
    %v576 = vadd.f32 0.0, %v575
    %v577 = vpop.f32.mrf.mxu0
    %578 = vdwg.mxu0
    %579 = vst.msk [vmem:[#allocation8] sm:$0xff] %vm64, %v484
    %580 = vst.msk [vmem:[#allocation8 + $0x8] sm:$0xff] %vm64, %v489
    %581 = vst.msk [vmem:[#allocation8 + $0x10] sm:$0xff] %vm64, %v571
    %582 = vst.msk [vmem:[#allocation8 + $0x18] sm:$0xff] %vm64, %v576
    // Predicated region
    $region26: #{tpu_custom_call.1} parent=1 // pred_check
      _
    $region27: #{tpu_custom_call.1} parent=1 // pred_check_branch
      %584 = sbr.rel (0) target = $region29
    $region28: #{tpu_custom_call.1} parent=1 // pred_region
      %s586 = ssub.s32 512, 512
      %587 = vsyncadd [#allocation4], %s586
      %s588 = sshll.u32 [#allocation8], 4
      %s589 = int_to_ptr.vmem [resolvable:$true] %s588
      %594 = dma.vmem_to_hbm [thread:$0]  %s589, 512, %s3, [#allocation4], 128, 128, 8
    $region29: #{tpu_custom_call.1} parent=1 // pred_fallthru
      _
    // Predicated region
    $region30: #{tpu_custom_call.1} parent=1 // pred_check
      _
    $region31: #{tpu_custom_call.1} parent=1 // pred_check_branch
      %596 = sbr.rel (0) target = $region33
    $region32: #{tpu_custom_call.1} parent=1 // pred_region
      %597 = dma.done [#allocation4], 512
    $region33: #{tpu_custom_call.1} parent=1 // pred_fallthru
      _
    %598 = vsyncpa [#allocation3], 1
    %599 = vsyncpa [#allocation6], 1
    %600 = vsyncpa [#allocation4], 1

</llo_original>
